<compile_context>
chip_gen: v7x
topology: tpu7x:2x2x1
jax: 0.10.0
libtpu: 0.0.40
codegen_flags: <defaults>
</compile_context>

<pallas_src>
import math
import functools

import jax
import jax.numpy as jnp
from jax.experimental import pallas as pl
from jax.experimental.pallas import tpu as pltpu


def _round_up(x, m):
    return ((x + m - 1) // m) * m


def _pad2(x, rows, cols):
    return jnp.pad(x, ((0, rows - x.shape[0]), (0, cols - x.shape[1])))


# -------------------- kernel 1: hoisted input projection ---------------------

def _input_proj_kernel(x_ref, w_ref, b_ref, h0_ref, *, n_valid):
    """H0 row tile = relu(X_tile @ W_in + b_in); padded node rows zeroed."""
    r = pl.program_id(0)
    tile_n = x_ref.shape[0]
    h = jnp.dot(x_ref[...], w_ref[...], preferred_element_type=jnp.float32)
    h = jnp.maximum(h + b_ref[...], 0.0)
    rows = jax.lax.broadcasted_iota(jnp.int32, h.shape, 0) + r * tile_n
    h0_ref[...] = jnp.where(rows < n_valid, h, 0.0).astype(h0_ref.dtype)


# ---------------- kernel 2: fused GCNII layer stack + out proj ---------------

def _gcnii_layers_kernel(a_ref, h0_ref, wp_ref, w_out_ref, b_out_ref,
                         out_ref, h_cur_ref, h_nxt_ref, *, alpha):
    """One grid step == one (layer, node-row-tile) of the GCNII stack.

    a_ref     : (tile_n, Np)   row tile of (1-alpha)*A_norm (streamed)
    h0_ref    : (Np, Dp) f32   initial residual H0 (VMEM resident, Buffered(1))
    wp_ref    : (1, Dp, Dp)    per-layer folded weight (1-beta) I + beta Wc
    w_out_ref : (Dp, Dout_p), b_out_ref: (1, Dout_p)
    out_ref   : (Np, Dout_p)   resident output block, written at the last layer
    h_cur_ref : (Np, Dp)       H read buffer   (scratch, persists across steps)
    h_nxt_ref : (Np, Dp)       H write buffer, published to h_cur at layer end
    """
    l = pl.program_id(0)
    r = pl.program_id(1)
    n_layers = pl.num_programs(0)
    n_row_tiles = pl.num_programs(1)
    tile_n = a_ref.shape[0]

    # Seed H with H0 once, before the first layer touches it.
    @pl.when((l == 0) & (r == 0))
    def _():
        h_cur_ref[...] = h0_ref[...].astype(h_cur_ref.dtype)

    row0 = pl.multiple_of(r * tile_n, tile_n)

    # M_r = A'[r,:] @ H + alpha * H0[r,:]        ((1-alpha) pre-folded into A')
    ah = jnp.dot(a_ref[...], h_cur_ref[...], preferred_element_type=jnp.float32)
    m = ah + alpha * h0_ref[pl.ds(row0, tile_n), :]

    # H_new[r,:] = relu(M_r @ W'_l)    (identity blend pre-folded into W'_l)
    h_new = jnp.maximum(
        jnp.dot(m.astype(wp_ref.dtype), wp_ref[0],
                preferred_element_type=jnp.float32),
        0.0)
    h_nxt_ref[pl.ds(row0, tile_n), :] = h_new.astype(h_nxt_ref.dtype)

    # End of layer: publish the fully-written H_new for the next layer's A@H.
    @pl.when(r == n_row_tiles - 1)
    def _():
        h_cur_ref[...] = h_nxt_ref[...]

    # Last layer: fused output projection on this row tile (output block is
    # VMEM resident for the whole grid and written back to HBM exactly once).
    @pl.when(l == n_layers - 1)
    def _():
        y = jnp.dot(h_new.astype(w_out_ref.dtype), w_out_ref[...],
                    preferred_element_type=jnp.float32)
        out_ref[pl.ds(row0, tile_n), :] = (y + b_out_ref[...]).astype(out_ref.dtype)


# --------------------------------- wrapper ------------------------------------

def gcnii_forward(a_norm, feature, params, *, lamda, alpha,
                  mxu_dtype=jnp.bfloat16, node_tile=None, lane=128):
    """Mirror of GCNII.forward (eval mode) with Pallas TPU kernels."""
    n, in_size = feature.shape
    hidden = params["w_in"].shape[1]
    out_size = params["w_out"].shape[1]
    n_layers = len(params["w_convs"])

    f32 = jnp.float32
    itm = jnp.dtype(mxu_dtype).itemsize

    # lane-dense zero padding (exact for the math: padded rows/cols contribute 0)
    n_p = _round_up(n, lane)
    in_p = _round_up(in_size, lane)
    hid_p = _round_up(hidden, lane)   # note: for hidden >= 128 on v6e/v7x, 256-multiples fill the 2x256 MXU better
    out_p = _round_up(out_size, lane)

    if node_tile is None:
        # keep A fully resident while it is small; stream 256-row slabs otherwise
        node_tile = n_p if n_p * n_p * itm <= 4 * 2**20 else 256
    node_tile = min(node_tile, n_p)
    assert n_p % node_tile == 0 and node_tile % 16 == 0
    n_row_tiles = n_p // node_tile

    # ---- host-side folding + wrapper-side casts to the MXU input dtype ------
    a_p = _pad2(((1.0 - alpha) * a_norm).astype(f32), n_p, n_p).astype(mxu_dtype)
    x_p = _pad2(feature.astype(f32), n_p, in_p).astype(mxu_dtype)
    w_in = _pad2(params["w_in"].astype(f32), in_p, hid_p).astype(mxu_dtype)
    b_in = _pad2(params["b_in"].astype(f32), 1, hid_p)
    w_out = _pad2(params["w_out"].astype(f32), hid_p, out_p).astype(mxu_dtype)
    b_out = _pad2(params["b_out"].astype(f32), 1, out_p)

    # Fold the identity blend:  (1-beta) M + beta (M @ Wc) == M @ ((1-beta) I + beta Wc)
    eye = jnp.eye(hidden, dtype=f32)
    w_primes = []
    for i, wc in enumerate(params["w_convs"]):
        beta = math.log(lamda / (i + 1) + 1.0)
        w_primes.append(_pad2((1.0 - beta) * eye + beta * wc.astype(f32),
                              hid_p, hid_p))
    wp = jnp.stack(w_primes).astype(mxu_dtype)

    # ---- stage 1: H0 = relu(X @ W_in + b_in)  (hoisted out of the layer loop)
    h0 = pl.pallas_call(
        functools.partial(_input_proj_kernel, n_valid=n),
        out_shape=jax.ShapeDtypeStruct((n_p, hid_p), f32),
        grid=(n_row_tiles,),
        in_specs=[
            pl.BlockSpec((node_tile, in_p), lambda r: (r, 0)),
            pl.BlockSpec((in_p, hid_p), lambda r: (0, 0),
                         pipeline_mode=pl.Buffered(1)),
            pl.BlockSpec((1, hid_p), lambda r: (0, 0),
                         pipeline_mode=pl.Buffered(1)),
        ],
        out_specs=pl.BlockSpec((node_tile, hid_p), lambda r: (r, 0)),
        compiler_params=pltpu.CompilerParams(
            dimension_semantics=("parallel",)),
    )(x_p, w_in, b_in)

    # ---- stage 2: fused layer stack + output projection ----------------------
    a_bufs = 2 if n_row_tiles > 1 else 1
    vmem_needed = (a_bufs * node_tile * n_p * itm      # streamed A row tiles
                   + n_p * hid_p * 4                   # resident H0 (f32)
                   + 2 * hid_p * hid_p * itm           # double-buffered W'_l
                   + hid_p * out_p * itm + out_p * 4   # W_out / b_out
                   + n_p * out_p * 4                   # resident output block
                   + 2 * n_p * hid_p * itm)            # H ping-pong scratch
    try:
        vmem_cap = int(pltpu.get_tpu_info().vmem_capacity_bytes)
    except Exception:
        vmem_cap = 64 * 2**20                          # conservative (v7x per-TC)
    vmem_limit = int(min(vmem_cap - 8 * 2**20,
                         max(2 * vmem_needed, 32 * 2**20)))

    flops = (n_layers * (2 * n_p * n_p * hid_p + 2 * n_p * hid_p * hid_p)
             + 2 * n_p * hid_p * out_p)
    bytes_accessed = (itm * ((n_layers if n_row_tiles > 1 else 1) * n_p * n_p
                             + n_layers * hid_p * hid_p + hid_p * out_p)
                      + 4 * (n_p * hid_p + out_p + n_p * out_p))

    out_padded = pl.pallas_call(
        functools.partial(_gcnii_layers_kernel, alpha=float(alpha)),
        out_shape=jax.ShapeDtypeStruct((n_p, out_p), feature.dtype),
        grid=(n_layers, n_row_tiles),
        in_specs=[
            # streamed row tiles of (1-alpha)*A_norm (resident when single-tile)
            pl.BlockSpec((node_tile, n_p), lambda l, r: (r, 0),
                         pipeline_mode=pl.Buffered(2 if n_row_tiles > 1 else 1)),
            # constant-index (resident) operands: single-buffered
            pl.BlockSpec((n_p, hid_p), lambda l, r: (0, 0),
                         pipeline_mode=pl.Buffered(1)),
            # per-layer folded conv weight: streamed, default double-buffered
            pl.BlockSpec((1, hid_p, hid_p), lambda l, r: (l, 0, 0)),
            pl.BlockSpec((hid_p, out_p), lambda l, r: (0, 0),
                         pipeline_mode=pl.Buffered(1)),
            pl.BlockSpec((1, out_p), lambda l, r: (0, 0),
                         pipeline_mode=pl.Buffered(1)),
        ],
        out_specs=pl.BlockSpec((n_p, out_p), lambda l, r: (0, 0)),
        scratch_shapes=[
            pltpu.VMEM((n_p, hid_p), mxu_dtype),   # H read  (persists across layers)
            pltpu.VMEM((n_p, hid_p), mxu_dtype),   # H write (published at layer end)
        ],
        compiler_params=pltpu.CompilerParams(
            # both axes carry sequential dependencies (layer recurrence; row
            # tiles share the H scratch) -> arbitrary.
            dimension_semantics=("arbitrary", "arbitrary"),
            vmem_limit_bytes=vmem_limit,
        ),
        cost_estimate=pl.CostEstimate(flops=flops, transcendentals=0,
                                      bytes_accessed=bytes_accessed),
    )(a_p, h0, wp, w_out, b_out)

    return out_padded[:n, :out_size]


# ---------------------------- pure-JAX reference ------------------------------

def gcnii_reference(a_norm, feature, params, *, lamda, alpha):
    hp = jax.lax.Precision.HIGHEST
    h = jnp.maximum(jnp.dot(feature, params["w_in"], precision=hp)
                    + params["b_in"], 0.0)
    h0 = h
    for i, wc in enumerate(params["w_convs"]):
        beta = math.log(lamda / (i + 1) + 1.0)
        m = (1.0 - alpha) * jnp.dot(a_norm, h, precision=hp) + alpha * h0
        h = jnp.maximum((1.0 - beta) * m + beta * jnp.dot(m, wc, precision=hp),
                        0.0)
    return jnp.dot(h, params["w_out"], precision=hp) + params["b_out"]


# ------------------------------ setup / main -----------------------------------

def init_params(key, in_size, hidden_size, out_size, n_layers, dtype=jnp.float32):
    keys = jax.random.split(key, 3 + n_layers)

    def lin_init(k, fan_in, fan_out):
        bound = 1.0 / math.sqrt(fan_in)
        return jax.random.uniform(k, (fan_in, fan_out), dtype, -bound, bound)

    params = {
        "w_in": lin_init(keys[0], in_size, hidden_size),
        "b_in": jax.random.uniform(keys[1], (1, hidden_size), dtype,
                                   -1.0 / math.sqrt(in_size),
                                   1.0 / math.sqrt(in_size)),
        "w_convs": [lin_init(keys[3 + i], hidden_size, hidden_size)
                    for i in range(n_layers)],
        "w_out": lin_init(keys[2], hidden_size, out_size),
        "b_out": jnp.zeros((1, out_size), dtype),
    }
    return params


def make_a_norm(key, n, dtype=jnp.float32):
    """Symmetric-normalized adjacency with self loops: D^-1/2 (A + I) D^-1/2."""
    raw = jax.random.uniform(key, (n, n))
    adj = (raw + raw.T > 1.2).astype(dtype)        # symmetric random graph
    adj = adj + jnp.eye(n, dtype=dtype)            # self loops
    deg = jnp.sum(adj, axis=1)
    d_inv_sqrt = 1.0 / jnp.sqrt(deg)
    return (adj * d_inv_sqrt[:, None]) * d_inv_sqrt[None, :]


if __name__ == "__main__":
    key = jax.random.PRNGKey(0)
    k_feat, k_adj, k_param = jax.random.split(key, 3)

    # small synthetic graph / model sizes (256 nodes -> 2 node-row tiles of 128,
    # so the row-tiled / ping-pong H path is actually exercised)
    n_nodes, in_size, hidden_size, out_size = 256, 48, 64, 16
    n_layers, lamda, alpha = 4, 0.5, 0.1

    feature = jax.random.normal(k_feat, (n_nodes, in_size), jnp.float32)
    a_norm = make_a_norm(k_adj, n_nodes)
    params = init_params(k_param, in_size, hidden_size, out_size, n_layers)

    ref = jax.block_until_ready(
        gcnii_reference(a_norm, feature, params, lamda=lamda, alpha=alpha))

    # default (performance) path: bf16 MXU inputs, f32 accumulation / residuals
    out = gcnii_forward(a_norm, feature, params, lamda=lamda, alpha=alpha,
                        node_tile=128)
    out = jax.block_until_ready(out)
    assert out.shape == (n_nodes, out_size)
    err_bf16 = float(jnp.max(jnp.abs(out - ref)))
    assert err_bf16 < 3e-2, f"bf16 path mismatch vs reference: max_err={err_bf16}"

    # structural parity check with f32 MXU inputs (tighter tolerance)
    out_f32 = jax.block_until_ready(
        gcnii_forward(a_norm, feature, params, lamda=lamda, alpha=alpha,
                      mxu_dtype=jnp.float32, node_tile=128))
    err_f32 = float(jnp.max(jnp.abs(out_f32 - ref)))
    assert err_f32 < 5e-3, f"f32 path mismatch vs reference: max_err={err_f32}"

    print("KERNEL_OK")
</pallas_src>

<mosaic_0001>
module attributes {stable_mosaic.version = 11 : i64} {
  func.func @_input_proj_kernel(%arg0: i32, %arg1: memref<128x128xbf16, #tpu.memory_space<vmem>>, %arg2: memref<128x128xbf16, #tpu.memory_space<vmem>>, %arg3: memref<1x128xf32, #tpu.memory_space<vmem>>, %arg4: memref<128x128xf32, #tpu.memory_space<vmem>>) attributes {dimension_semantics = [#tpu.dimension_semantics<parallel>], iteration_bounds = array<i64: 2>, scalar_prefetch = 0 : i64, scratch_operands = 0 : i64, tpu.core_type = #tpu.core_type<tc>, window_params = [{transform_indices = @transform_0, window_bounds = array<i64: 128, 128>}, {pipeline_mode = #tpu.pipeline_mode<synchronous>, transform_indices = @transform_1, window_bounds = array<i64: 128, 128>}, {pipeline_mode = #tpu.pipeline_mode<synchronous>, transform_indices = @transform_2, window_bounds = array<i64: 1, 128>}, {transform_indices = @transform_3, window_bounds = array<i64: 128, 128>}]} {
    %c0 = arith.constant 0 : index
    %c0_0 = arith.constant 0 : index
    %0 = vector.load %arg1[%c0, %c0_0] : memref<128x128xbf16, #tpu.memory_space<vmem>>, vector<128x128xbf16>
    %c0_1 = arith.constant 0 : index
    %c0_2 = arith.constant 0 : index
    %1 = vector.load %arg2[%c0_1, %c0_2] : memref<128x128xbf16, #tpu.memory_space<vmem>>, vector<128x128xbf16>
    %cst = arith.constant dense<0.000000e+00> : vector<128x128xf32>
    %2 = tpu.matmul %0, %1, %cst {dimension_numbers = #tpu.dot_dimension_numbers<[1], [0], [0], [1], [0, 0, 1, 1], [], []>} : vector<128x128xbf16>, vector<128x128xbf16>, vector<128x128xf32> -> vector<128x128xf32>
    %c0_3 = arith.constant 0 : index
    %c0_4 = arith.constant 0 : index
    %3 = vector.load %arg3[%c0_3, %c0_4] : memref<1x128xf32, #tpu.memory_space<vmem>>, vector<1x128xf32>
    %4 = vector.broadcast %3 : vector<1x128xf32> to vector<128x128xf32>
    %5 = arith.addf %2, %4 : vector<128x128xf32>
    %cst_5 = arith.constant 0.000000e+00 : f32
    %6 = vector.broadcast %cst_5 : f32 to vector<128x128xf32>
    %7 = arith.maximumf %5, %6 : vector<128x128xf32>
    %8 = tpu.iota {dimensions = array<i32: 0>} : vector<128x128xi32>
    %c128_i32 = arith.constant 128 : i32
    %9 = arith.muli %arg0, %c128_i32 : i32
    %10 = vector.broadcast %9 : i32 to vector<128x128xi32>
    %11 = arith.addi %8, %10 : vector<128x128xi32>
    %c256_i32 = arith.constant 256 : i32
    %12 = vector.broadcast %c256_i32 : i32 to vector<128x128xi32>
    %13 = arith.cmpi slt, %11, %12 : vector<128x128xi32>
    %cst_6 = arith.constant 0.000000e+00 : f32
    %14 = vector.broadcast %cst_6 : f32 to vector<128x128xf32>
    %15 = arith.select %13, %7, %14 : vector<128x128xi1>, vector<128x128xf32>
    %c0_7 = arith.constant 0 : index
    %c0_8 = arith.constant 0 : index
    %16 = vector.load %arg4[%c0_7, %c0_8] : memref<128x128xf32, #tpu.memory_space<vmem>>, vector<128x128xf32>
    tpu.vector_store %arg4[%c0_7, %c0_8], %15 {strides = array<i32>} : memref<128x128xf32, #tpu.memory_space<vmem>>, vector<128x128xf32>,
    return
  }
  func.func @transform_0(%arg0: i32) -> (i32, i32) {
    %c0_i32 = arith.constant 0 : i32
    %c0_i32_0 = arith.constant 0 : i32
    return %arg0, %c0_i32 : i32, i32
  }
  func.func @transform_1(%arg0: i32) -> (i32, i32) {
    %c0_i32 = arith.constant 0 : i32
    %c0_i32_0 = arith.constant 0 : i32
    %c0_i32_1 = arith.constant 0 : i32
    return %c0_i32, %c0_i32_0 : i32, i32
  }
  func.func @transform_2(%arg0: i32) -> (i32, i32) {
    %c0_i32 = arith.constant 0 : i32
    %c0_i32_0 = arith.constant 0 : i32
    %c0_i32_1 = arith.constant 0 : i32
    return %c0_i32, %c0_i32_0 : i32, i32
  }
  func.func @transform_3(%arg0: i32) -> (i32, i32) {
    %c0_i32 = arith.constant 0 : i32
    %c0_i32_0 = arith.constant 0 : i32
    return %arg0, %c0_i32 : i32, i32
  }
}

</mosaic_0001>

<llo_original>
// kernel: tpu_custom_call.1
$region0: #{tpu_custom_call.1}
  #allocation0 [shape = 'u32[]', space=smem, size = 0x4, offset = 0x4, fixed_abs, tag = 'smem constant byte address 0x4 - core index']
  #allocation1 [shape = 'u32[144,128]{1,0:T(1,128)}', space=vmem, size = 0x12000, scoped, tag = 'internal scratch']
  %s0 = inlined_call_operand.hbm [shape: bf16[256,128], index: 0, kind: input, shape index: {}]
  %s1 = inlined_call_operand.hbm [shape: bf16[128,128], index: 1, kind: input, shape index: {}]
  %s2 = inlined_call_operand.vmem [shape: f32[1,128], index: 2, kind: input, shape index: {}]
  %s3 = inlined_call_operand.hbm [shape: f32[256,128], index: 3, kind: output, shape index: {}]
  %s4 = sld [smem:[#allocation0]]
  $region53: #{tpu_custom_call.1} parent=0
    _
  %s6 = ssub.s32 1, %s4
  %s7 = scalar_select 0, %s6, %s4
  $region1: #{tpu_custom_call.1} parent=0
    #allocation2 [shape = 'u8[65536]{0}', space=vmem, size = 0x10000, scoped, tag = 'input window, operand 0']
    #allocation3 [shape = 's32[2]{0}', space=sflag, size = 0x8, scoped, tag = 'scoped memory for tpu_custom_call.1']
    #allocation4 [shape = 's32[2]{0}', space=sflag, size = 0x8, scoped, tag = 'scoped memory for tpu_custom_call.1']
    #allocation5 [shape = 'u8[32768]{0}', space=vmem, size = 0x8000, scoped, tag = 'input window, operand 1, single buffered']
    #allocation6 [shape = 's32[1]{0}', space=sflag, size = 0x4, scoped, tag = 'scoped memory for tpu_custom_call.1']
    #allocation7 [shape = 'u8[131072]{0}', space=vmem, size = 0x20000, scoped, tag = 'output window, operand 0']
    %8 = vsyncpa [#allocation3], 0
    %s9 = scalar_lea.sflag [#allocation3], 1
    %10 = vsyncpa %s9, 0
    %11 = vsyncpa [#allocation6], 0
    %12 = vsyncpa [#allocation4], 0
    %s13 = scalar_lea.sflag [#allocation4], 1
    %14 = vsyncpa %s13, 0
    loop: start=0, step=1, limit=4
    $region2: #{tpu_custom_call.1} parent=1 // loop_pre_header
      _
    $region3: #{tpu_custom_call.1} parent=1 // loop_header
      %s16 = sphi 0, %s20
      %p17 = scmp.ge.s32.totalorder %s16, 4
      %s26 = sphi 0, %s28
      %s29 = sphi 0, %s26
      %s30 = sphi 0, %s29
      %s46 = sphi 0, %s30
      %s50 = sphi 0, %s50
      %s52 = sphi 0, %s50
      %s53 = sphi 0, %s52
      %s67 = sphi 0, %s53
      %s71 = sphi 0, %s71
      %s73 = sphi 0, %s71
      %s74 = sphi 0, %s73
      %s88 = sphi 0, %s74
      %s94 = sphi 0, %s96
      %s97 = sphi 0, %s94
      %s98 = sphi 0, %s97
      %s114 = sphi 0, %s98
    $region4: #{tpu_custom_call.1} parent=1 // loop_header_branch
      %19 = sbr.rel (%p17) target = $region8
    $region5: #{tpu_custom_call.1} parent=1 // loop_body
      %s21 = ssub.s32 %s16, 1
      %s22 = ssub.s32 %s16, 2
      %s23 = sadd.s32 %s16, 1
      %s24 = ssub.s32 %s16, %s23
      %p25 = scmp.eq.s32.totalorder %s24, 0
      %s27 = sadd.s32 %s26, 1
      %s28 = scalar_select %p25, %s26, %s27
      %p31 = pneg %p25
      %p32 = scmp.eq.s32.totalorder %s16, 1
      %p33 = por %p31, %p32
      %p34 = scmp.ne.s32.totalorder %s26, %s29
      %p35 = scmp.eq.s32.totalorder %s16, 0
      %p36 = por %p34, %p35
      %p37 = scmp.ne.s32.totalorder %s26, %s29
      %p38 = scmp.eq.s32.totalorder %s21, 1
      %p39 = por %p37, %p38
      %p40 = scmp.ne.s32.totalorder %s29, %s30
      %p41 = scmp.eq.s32.totalorder %s21, 0
      %p42 = por %p40, %p41
      %p43 = scmp.ne.s32.totalorder %s29, %s30
      %p44 = scmp.eq.s32.totalorder %s22, 1
      %p45 = por %p43, %p44
      %p47 = scmp.ne.s32.totalorder %s30, %s46
      %p48 = scmp.eq.s32.totalorder %s22, 0
      %p49 = por %p47, %p48
      %s51 = sadd.s32 %s50, 1
      %p54 = scmp.eq.s32.totalorder %s16, 1
      %p55 = scmp.ne.s32.totalorder %s50, %s52
      %p56 = scmp.eq.s32.totalorder %s16, 0
      %p57 = por %p55, %p56
      %p58 = scmp.ne.s32.totalorder %s50, %s52
      %p59 = scmp.eq.s32.totalorder %s21, 1
      %p60 = por %p58, %p59
      %p61 = scmp.ne.s32.totalorder %s52, %s53
      %p62 = scmp.eq.s32.totalorder %s21, 0
      %p63 = por %p61, %p62
      %p64 = scmp.ne.s32.totalorder %s52, %s53
      %p65 = scmp.eq.s32.totalorder %s22, 1
      %p66 = por %p64, %p65
      %p68 = scmp.ne.s32.totalorder %s53, %s67
      %p69 = scmp.eq.s32.totalorder %s22, 0
      %p70 = por %p68, %p69
      %s72 = sadd.s32 %s71, 1
      %p75 = scmp.eq.s32.totalorder %s16, 1
      %p76 = scmp.ne.s32.totalorder %s71, %s73
      %p77 = scmp.eq.s32.totalorder %s16, 0
      %p78 = por %p76, %p77
      %p79 = scmp.ne.s32.totalorder %s71, %s73
      %p80 = scmp.eq.s32.totalorder %s21, 1
      %p81 = por %p79, %p80
      %p82 = scmp.ne.s32.totalorder %s73, %s74
      %p83 = scmp.eq.s32.totalorder %s21, 0
      %p84 = por %p82, %p83
      %p85 = scmp.ne.s32.totalorder %s73, %s74
      %p86 = scmp.eq.s32.totalorder %s22, 1
      %p87 = por %p85, %p86
      %p89 = scmp.ne.s32.totalorder %s74, %s88
      %p90 = scmp.eq.s32.totalorder %s22, 0
      %p91 = por %p89, %p90
      %s92 = ssub.s32 %s16, %s23
      %p93 = scmp.eq.s32.totalorder %s92, 0
      %s95 = sadd.s32 %s94, 1
      %s96 = scalar_select %p93, %s94, %s95
      %p99 = pneg %p93
      %p100 = scmp.eq.s32.totalorder %s16, 1
      %p101 = por %p99, %p100
      %p102 = scmp.ne.s32.totalorder %s94, %s97
      %p103 = scmp.eq.s32.totalorder %s16, 0
      %p104 = por %p102, %p103
      %p105 = scmp.ne.s32.totalorder %s94, %s97
      %p106 = scmp.eq.s32.totalorder %s21, 1
      %p107 = por %p105, %p106
      %p108 = scmp.ne.s32.totalorder %s97, %s98
      %p109 = scmp.eq.s32.totalorder %s21, 0
      %p110 = por %p108, %p109
      %p111 = scmp.ne.s32.totalorder %s97, %s98
      %p112 = scmp.eq.s32.totalorder %s22, 1
      %p113 = por %p111, %p112
      %p115 = scmp.ne.s32.totalorder %s98, %s114
      %p116 = scmp.eq.s32.totalorder %s22, 0
      %p117 = por %p115, %p116
      %p118 = scmp.le.s32.totalorder 1, %s16
      %p119 = scmp.lt.s32.totalorder %s16, 3
      %p120 = pnand %p118, %p119
      %p121 = pneg %p120
      // Predicated region
      $region9: #{tpu_custom_call.1} parent=5 // pred_check
        _
      $region10: #{tpu_custom_call.1} parent=5 // pred_check_branch
        %123 = sbr.rel (%p120) target = $region12
      $region11: #{tpu_custom_call.1} parent=5 // pred_region
        %s124 = ssub.s32 %s16, 1
        // Predicated region
        $region13: #{tpu_custom_call.1} parent=11 // pred_check
          %p125 = pneg %p63
        $region14: #{tpu_custom_call.1} parent=11 // pred_check_branch
          %127 = sbr.rel (%p125) target = $region16
        $region15: #{tpu_custom_call.1} parent=11 // pred_region
          %s129 = ssub.s32 1024, 1024
          %130 = vsyncadd [#allocation6], %s129
          %s131 = sshll.u32 [#allocation5], 4
          %s132 = int_to_ptr.vmem [resolvable:$true] %s131
          %137 = dma.hbm_to_vmem [thread:$0]  %s1, 1024, %s132, [#allocation6], 64, 64, 4
        $region16: #{tpu_custom_call.1} parent=11 // pred_fallthru
          _
        // Predicated region
        $region17: #{tpu_custom_call.1} parent=11 // pred_check
          %p138 = pneg %p84
        $region18: #{tpu_custom_call.1} parent=11 // pred_check_branch
          %140 = sbr.rel (%p138) target = $region20
        $region19: #{tpu_custom_call.1} parent=11 // pred_region
          _
        $region20: #{tpu_custom_call.1} parent=11 // pred_fallthru
          _
      $region12: #{tpu_custom_call.1} parent=5 // pred_fallthru
        _
      %p141 = scmp.lt.s32.totalorder %s16, 2
      // Predicated region
      $region21: #{tpu_custom_call.1} parent=5 // pred_check
        %p142 = pneg %p141
      $region22: #{tpu_custom_call.1} parent=5 // pred_check_branch
        %144 = sbr.rel (%p142) target = $region24
      $region23: #{tpu_custom_call.1} parent=5 // pred_region
        // Predicated region
        $region25: #{tpu_custom_call.1} parent=23 // pred_check
          %p145 = pneg %p36
        $region26: #{tpu_custom_call.1} parent=23 // pred_check_branch
          %147 = sbr.rel (%p145) target = $region28
        $region27: #{tpu_custom_call.1} parent=23 // pred_region
          %s148 = sand.u32 %s26, 1
          %s149 = scalar_lea.sflag [#allocation3], %s148
          %s150 = sand.u32 %s26, 1
          %s151 = smul.addr %s150, 64
          %s152 = scalar_lea.vmem [#allocation2], %s151
          %s153 = smul.u32 16, %s16
          %s155 = ssub.s32 1024, 1024
          %156 = vsyncadd %s149, %s155
          %s157 = smul.addr %s153, 64
          %s158 = scalar_lea.hbm %s0, %s157
          %s159 = sshll.u32 %s152, 4
          %s160 = int_to_ptr.vmem [resolvable:$true] %s159
          %165 = dma.hbm_to_vmem [thread:$0]  %s158, 1024, %s160, %s149, 64, 64, 4
        $region28: #{tpu_custom_call.1} parent=23 // pred_fallthru
          _
      $region24: #{tpu_custom_call.1} parent=5 // pred_fallthru
        _
      %p166 = scmp.le.s32.totalorder 1, %s16
      %p167 = scmp.lt.s32.totalorder %s16, 3
      %p168 = pnand %p166, %p167
      %p169 = pneg %p168
      // Predicated region
      $region29: #{tpu_custom_call.1} parent=5 // pred_check
        _
      $region30: #{tpu_custom_call.1} parent=5 // pred_check_branch
        %171 = sbr.rel (%p168) target = $region32
      $region31: #{tpu_custom_call.1} parent=5 // pred_region
        %s172 = ssub.s32 %s16, 1
        %s173 = sand.u32 %s29, 1
        %s174 = scalar_lea.sflag [#allocation3], %s173
        %s175 = sand.u32 %s29, 1
        %s176 = smul.addr %s175, 64
        %s177 = scalar_lea.vmem [#allocation2], %s176
        // Predicated region
        $region33: #{tpu_custom_call.1} parent=31 // pred_check
          %p178 = pneg %p42
        $region34: #{tpu_custom_call.1} parent=31 // pred_check_branch
          %180 = sbr.rel (%p178) target = $region36
        $region35: #{tpu_custom_call.1} parent=31 // pred_region
          %181 = dma.done %s174, 1024
        $region36: #{tpu_custom_call.1} parent=31 // pred_fallthru
          _
        // Predicated region
        $region37: #{tpu_custom_call.1} parent=31 // pred_check
          %p182 = pneg %p63
        $region38: #{tpu_custom_call.1} parent=31 // pred_check_branch
          %184 = sbr.rel (%p182) target = $region40
        $region39: #{tpu_custom_call.1} parent=31 // pred_region
          %185 = dma.done [#allocation6], 1024
        $region40: #{tpu_custom_call.1} parent=31 // pred_fallthru
          _
        %s186 = sand.u32 %s29, 1
        %s187 = scalar_lea.sflag [#allocation3], %s186
        %s188 = sand.u32 %s29, 1
        %s189 = smul.addr %s188, 64
        %s190 = scalar_lea.vmem [#allocation2], %s189
        %p191 = pneg %p42
        %p192 = pneg %p39
        %p193 = pneg %p63
        %p194 = pneg %p60
        %p195 = pneg %p84
        %p196 = pneg %p81
        %p197 = pneg %p110
        %p198 = pneg %p107
        %s199 = sand.u32 %s97, 1
        %s200 = scalar_lea.sflag [#allocation4], %s199
        %s201 = sand.u32 %s97, 1
        %s202 = smul.addr %s201, 128
        %s203 = scalar_lea.vmem [#allocation7], %s202
        %s204 = smul.u32 16, %s21
        %s205 = smul.u32 16, %s21
        %v207 = vld [vmem:[%s177] sm:$0xf]
        %v208 = vld [vmem:[%s177 + $0x4] sm:$0xf]
        %v209 = vld [vmem:[%s177 + $0x8] sm:$0xf]
        %v210 = vld [vmem:[%s177 + $0xc] sm:$0xf]
        %v211 = vld [vmem:[%s177 + $0x10] sm:$0xf]
        %v212 = vld [vmem:[%s177 + $0x14] sm:$0xf]
        %v213 = vld [vmem:[%s177 + $0x18] sm:$0xf]
        %v214 = vld [vmem:[%s177 + $0x1c] sm:$0xf]
        %v215 = vld [vmem:[%s177 + $0x20] sm:$0xf]
        %v216 = vld [vmem:[%s177 + $0x24] sm:$0xf]
        %v217 = vld [vmem:[%s177 + $0x28] sm:$0xf]
        %v218 = vld [vmem:[%s177 + $0x2c] sm:$0xf]
        %v219 = vld [vmem:[%s177 + $0x30] sm:$0xf]
        %v220 = vld [vmem:[%s177 + $0x34] sm:$0xf]
        %v221 = vld [vmem:[%s177 + $0x38] sm:$0xf]
        %v222 = vld [vmem:[%s177 + $0x3c] sm:$0xf]
        %v223 = vld [vmem:[#allocation5] sm:$0xf]
        %v224 = vld [vmem:[#allocation5 + $0x4] sm:$0xf]
        %v225 = vld [vmem:[#allocation5 + $0x8] sm:$0xf]
        %v226 = vld [vmem:[#allocation5 + $0xc] sm:$0xf]
        %v227 = vld [vmem:[#allocation5 + $0x10] sm:$0xf]
        %v228 = vld [vmem:[#allocation5 + $0x14] sm:$0xf]
        %v229 = vld [vmem:[#allocation5 + $0x18] sm:$0xf]
        %v230 = vld [vmem:[#allocation5 + $0x1c] sm:$0xf]
        %v231 = vld [vmem:[#allocation5 + $0x20] sm:$0xf]
        %v232 = vld [vmem:[#allocation5 + $0x24] sm:$0xf]
        %v233 = vld [vmem:[#allocation5 + $0x28] sm:$0xf]
        %v234 = vld [vmem:[#allocation5 + $0x2c] sm:$0xf]
        %v235 = vld [vmem:[#allocation5 + $0x30] sm:$0xf]
        %v236 = vld [vmem:[#allocation5 + $0x34] sm:$0xf]
        %v237 = vld [vmem:[#allocation5 + $0x38] sm:$0xf]
        %v238 = vld [vmem:[#allocation5 + $0x3c] sm:$0xf]
        %v239 = vld [vmem:[%s2] sm:$0x1]
        %v241 = vlaneseq
        %v242 = vshrl.u32 %v241, 7
        %v243 = vsub.s32 0, %v242
        %v244 = vrot.slane %v239, %v243
        %v262 = vunpack.c.l.b16 %v207
        %v263 = vunpack.c.l.b16 %v208
        %v264 = vunpack.c.l.b16 %v209
        %v265 = vunpack.c.l.b16 %v210
        %v266 = vunpack.c.l.b16 %v211
        %v267 = vunpack.c.l.b16 %v212
        %v268 = vunpack.c.l.b16 %v213
        %v269 = vunpack.c.l.b16 %v214
        %v270 = vunpack.c.l.b16 %v215
        %v271 = vunpack.c.l.b16 %v216
        %v272 = vunpack.c.l.b16 %v217
        %v273 = vunpack.c.l.b16 %v218
        %v274 = vunpack.c.l.b16 %v219
        %v275 = vunpack.c.l.b16 %v220
        %v276 = vunpack.c.l.b16 %v221
        %v277 = vunpack.c.l.b16 %v222
        %v278 = vpack.c.b16 %v263, %v262
        %v279 = vpack.c.b16 %v265, %v264
        %v280 = vpack.c.b16 %v267, %v266
        %v281 = vpack.c.b16 %v269, %v268
        %v282 = vpack.c.b16 %v271, %v270
        %v283 = vpack.c.b16 %v273, %v272
        %v284 = vpack.c.b16 %v275, %v274
        %v285 = vpack.c.b16 %v277, %v276
        %v310 = vunpack.c.l.b16 %v223
        %v311 = vunpack.c.l.b16 %v224
        %v312 = vunpack.c.l.b16 %v225
        %v313 = vunpack.c.l.b16 %v226
        %v314 = vunpack.c.l.b16 %v227
        %v315 = vunpack.c.l.b16 %v228
        %v316 = vunpack.c.l.b16 %v229
        %v317 = vunpack.c.l.b16 %v230
        %v318 = vunpack.c.l.b16 %v231
        %v319 = vunpack.c.l.b16 %v232
        %v320 = vunpack.c.l.b16 %v233
        %v321 = vunpack.c.l.b16 %v234
        %v322 = vunpack.c.l.b16 %v235
        %v323 = vunpack.c.l.b16 %v236
        %v324 = vunpack.c.l.b16 %v237
        %v325 = vunpack.c.l.b16 %v238
        %v326 = vpack.c.b16 %v311, %v310
        %v327 = vpack.c.b16 %v313, %v312
        %v328 = vpack.c.b16 %v315, %v314
        %v329 = vpack.c.b16 %v317, %v316
        %v330 = vpack.c.b16 %v319, %v318
        %v331 = vpack.c.b16 %v321, %v320
        %v332 = vpack.c.b16 %v323, %v322
        %v333 = vpack.c.b16 %v325, %v324
        %342 = vmatprep.subr.bf16.mxu0 0
        %343 = vmatpush1.bf16.msra.mxu0 %v326
        %344 = vmatprep.subr.bf16.mxu0 0
        %345 = vmatpush1.bf16.msra.mxu0 %v327
        %346 = vmatprep.subr.bf16.mxu0 0
        %347 = vmatpush1.bf16.msra.mxu0 %v328
        %348 = vmatprep.subr.bf16.mxu0 0
        %349 = vmatpush1.bf16.msra.mxu0 %v329
        %350 = vmatprep.subr.bf16.mxu0 0
        %351 = vmatpush1.bf16.msra.mxu0 %v330
        %352 = vmatprep.subr.bf16.mxu0 0
        %353 = vmatpush1.bf16.msra.mxu0 %v331
        %354 = vmatprep.subr.bf16.mxu0 0
        %355 = vmatpush1.bf16.msra.mxu0 %v332
        %356 = vmatprep.subr.bf16.mxu0 0
        %357 = vmatpush1.bf16.msra.mxu0 %v333
        %358 = vmatprep.subr.bf16.mxu0 0
        %359 = vmatpush1.bf16.msra.mxu0 0
        %360 = vmatprep.subr.bf16.mxu0 0
        %361 = vmatpush1.bf16.msra.mxu0 0
        %362 = vmatprep.subr.bf16.mxu0 0
        %363 = vmatpush1.bf16.msra.mxu0 0
        %364 = vmatprep.subr.bf16.mxu0 0
        %365 = vmatpush1.bf16.msra.mxu0 0
        %366 = vmatprep.subr.bf16.mxu0 0
        %367 = vmatpush1.bf16.msra.mxu0 0
        %368 = vmatprep.subr.bf16.mxu0 0
        %369 = vmatpush1.bf16.msra.mxu0 0
        %370 = vmatprep.subr.bf16.mxu0 0
        %371 = vmatpush1.bf16.msra.mxu0 0
        %372 = vmatprep.subr.bf16.mxu0 0
        %373 = vmatpush1.bf16.msra.mxu0 0
        %374 = vmatprep.mubr.bf16.mxu0 0
        %375 = vmatmul.mubr.bf16.gmra.mrb[0].mxu0 %v278
        %v376 = vpop.f32.mrb[0].mxu0
        %v377 = vadd.f32 %v244, %v376
        %v378 = vpop.f32.mrb[0].mxu0
        %v379 = vpop.f32.mrb[0].mxu0
        %v380 = vadd.f32 %v244, %v379
        %v381 = vpop.f32.mrb[0].mxu0
        %382 = vmatprep.mubr.bf16.mxu0 0
        %383 = vmatmul.mubr.bf16.gmra.mrb[0].mxu0 %v279
        %v384 = vpop.f32.mrb[0].mxu0
        %v385 = vadd.f32 %v244, %v384
        %v386 = vpop.f32.mrb[0].mxu0
        %v387 = vpop.f32.mrb[0].mxu0
        %v388 = vadd.f32 %v244, %v387
        %v389 = vpop.f32.mrb[0].mxu0
        %390 = vmatprep.mubr.bf16.mxu0 0
        %391 = vmatmul.mubr.bf16.gmra.mrb[0].mxu0 %v280
        %v392 = vpop.f32.mrb[0].mxu0
        %v393 = vadd.f32 %v244, %v392
        %v394 = vpop.f32.mrb[0].mxu0
        %v395 = vpop.f32.mrb[0].mxu0
        %v396 = vadd.f32 %v244, %v395
        %v397 = vpop.f32.mrb[0].mxu0
        %398 = vmatprep.mubr.bf16.mxu0 0
        %399 = vmatmul.mubr.bf16.gmra.mrb[0].mxu0 %v281
        %v400 = vpop.f32.mrb[0].mxu0
        %v401 = vadd.f32 %v244, %v400
        %v402 = vpop.f32.mrb[0].mxu0
        %v403 = vpop.f32.mrb[0].mxu0
        %v404 = vadd.f32 %v244, %v403
        %v405 = vpop.f32.mrb[0].mxu0
        %406 = vmatprep.mubr.bf16.mxu0 0
        %407 = vmatmul.mubr.bf16.gmra.mrb[0].mxu0 %v282
        %v408 = vpop.f32.mrb[0].mxu0
        %v409 = vadd.f32 %v244, %v408
        %v410 = vpop.f32.mrb[0].mxu0
        %v411 = vpop.f32.mrb[0].mxu0
        %v412 = vadd.f32 %v244, %v411
        %v413 = vpop.f32.mrb[0].mxu0
        %414 = vmatprep.mubr.bf16.mxu0 0
        %415 = vmatmul.mubr.bf16.gmra.mrb[0].mxu0 %v283
        %v416 = vpop.f32.mrb[0].mxu0
        %v417 = vadd.f32 %v244, %v416
        %v418 = vpop.f32.mrb[0].mxu0
        %v419 = vpop.f32.mrb[0].mxu0
        %v420 = vadd.f32 %v244, %v419
        %v421 = vpop.f32.mrb[0].mxu0
        %422 = vmatprep.mubr.bf16.mxu0 0
        %423 = vmatmul.mubr.bf16.gmra.mrb[0].mxu0 %v284
        %v424 = vpop.f32.mrb[0].mxu0
        %v425 = vadd.f32 %v244, %v424
        %v426 = vpop.f32.mrb[0].mxu0
        %v427 = vpop.f32.mrb[0].mxu0
        %v428 = vadd.f32 %v244, %v427
        %v429 = vpop.f32.mrb[0].mxu0
        %430 = vmatprep.mubr.bf16.mxu0 0
        %431 = vmatmul.mubr.bf16.gmra.mrb[0].mxu0 %v285
        %v432 = vpop.f32.mrb[0].mxu0
        %v433 = vadd.f32 %v244, %v432
        %v434 = vpop.f32.mrb[0].mxu0
        %v435 = vpop.f32.mrb[0].mxu0
        %v436 = vadd.f32 %v244, %v435
        %v437 = vpop.f32.mrb[0].mxu0
        %438 = vdwg.mxu0
        %v439 = vmax.f32 %v377, 0.0
        %v440 = vmax.f32 %v380, 0.0
        %v441 = vmax.f32 %v385, 0.0
        %v442 = vmax.f32 %v388, 0.0
        %v443 = vmax.f32 %v393, 0.0
        %v444 = vmax.f32 %v396, 0.0
        %v445 = vmax.f32 %v401, 0.0
        %v446 = vmax.f32 %v404, 0.0
        %v447 = vmax.f32 %v409, 0.0
        %v448 = vmax.f32 %v412, 0.0
        %v449 = vmax.f32 %v417, 0.0
        %v450 = vmax.f32 %v420, 0.0
        %v451 = vmax.f32 %v425, 0.0
        %v452 = vmax.f32 %v428, 0.0
        %v453 = vmax.f32 %v433, 0.0
        %v454 = vmax.f32 %v436, 0.0
        %v455 = vlaneseq
        %v456 = vshrl.u32 %v455, 7
        %v457 = vadd.s32 %v456, 8
        %v458 = vadd.s32 %v456, 16
        %v459 = vadd.s32 %v456, 24
        %v460 = vadd.s32 %v456, 32
        %v461 = vadd.s32 %v456, 40
        %v462 = vadd.s32 %v456, 48
        %v463 = vadd.s32 %v456, 56
        %v464 = vadd.s32 %v456, 64
        %v465 = vadd.s32 %v456, 72
        %v466 = vadd.s32 %v456, 80
        %v467 = vadd.s32 %v456, 88
        %v468 = vadd.s32 %v456, 96
        %v469 = vadd.s32 %v456, 104
        %v470 = vadd.s32 %v456, 112
        %v471 = vadd.s32 %v456, 120
        %s472 = smul.u32 %s21, 128
        %v473 = vstv %s472
        %v474 = vadd.s32 %v456, %v473
        %v475 = vadd.s32 %v457, %v473
        %v476 = vadd.s32 %v458, %v473
        %v477 = vadd.s32 %v459, %v473
        %v478 = vadd.s32 %v460, %v473
        %v479 = vadd.s32 %v461, %v473
        %v480 = vadd.s32 %v462, %v473
        %v481 = vadd.s32 %v463, %v473
        %v482 = vadd.s32 %v464, %v473
        %v483 = vadd.s32 %v465, %v473
        %v484 = vadd.s32 %v466, %v473
        %v485 = vadd.s32 %v467, %v473
        %v486 = vadd.s32 %v468, %v473
        %v487 = vadd.s32 %v469, %v473
        %v488 = vadd.s32 %v470, %v473
        %v489 = vadd.s32 %v471, %v473
        %vm490 = vcmp.lt.s32.totalorder %v474, 256
        %vm491 = vcmp.lt.s32.totalorder %v475, 256
        %vm492 = vcmp.lt.s32.totalorder %v476, 256
        %vm493 = vcmp.lt.s32.totalorder %v477, 256
        %vm494 = vcmp.lt.s32.totalorder %v478, 256
        %vm495 = vcmp.lt.s32.totalorder %v479, 256
        %vm496 = vcmp.lt.s32.totalorder %v480, 256
        %vm497 = vcmp.lt.s32.totalorder %v481, 256
        %vm498 = vcmp.lt.s32.totalorder %v482, 256
        %vm499 = vcmp.lt.s32.totalorder %v483, 256
        %vm500 = vcmp.lt.s32.totalorder %v484, 256
        %vm501 = vcmp.lt.s32.totalorder %v485, 256
        %vm502 = vcmp.lt.s32.totalorder %v486, 256
        %vm503 = vcmp.lt.s32.totalorder %v487, 256
        %vm504 = vcmp.lt.s32.totalorder %v488, 256
        %vm505 = vcmp.lt.s32.totalorder %v489, 256
        %v506 = vsel %vm490, %v439, 0.0
        %v507 = vsel %vm491, %v440, 0.0
        %v508 = vsel %vm492, %v441, 0.0
        %v509 = vsel %vm493, %v442, 0.0
        %v510 = vsel %vm494, %v443, 0.0
        %v511 = vsel %vm495, %v444, 0.0
        %v512 = vsel %vm496, %v445, 0.0
        %v513 = vsel %vm497, %v446, 0.0
        %v514 = vsel %vm498, %v447, 0.0
        %v515 = vsel %vm499, %v448, 0.0
        %v516 = vsel %vm500, %v449, 0.0
        %v517 = vsel %vm501, %v450, 0.0
        %v518 = vsel %vm502, %v451, 0.0
        %v519 = vsel %vm503, %v452, 0.0
        %v520 = vsel %vm504, %v453, 0.0
        %v521 = vsel %vm505, %v454, 0.0
        %522 = vst [vmem:[%s203] sm:$0xff] %v506
        %523 = vst [vmem:[%s203 + $0x8] sm:$0xff] %v507
        %524 = vst [vmem:[%s203 + $0x10] sm:$0xff] %v508
        %525 = vst [vmem:[%s203 + $0x18] sm:$0xff] %v509
        %526 = vst [vmem:[%s203 + $0x20] sm:$0xff] %v510
        %527 = vst [vmem:[%s203 + $0x28] sm:$0xff] %v511
        %528 = vst [vmem:[%s203 + $0x30] sm:$0xff] %v512
        %529 = vst [vmem:[%s203 + $0x38] sm:$0xff] %v513
        %530 = vst [vmem:[%s203 + $0x40] sm:$0xff] %v514
        %531 = vst [vmem:[%s203 + $0x48] sm:$0xff] %v515
        %532 = vst [vmem:[%s203 + $0x50] sm:$0xff] %v516
        %533 = vst [vmem:[%s203 + $0x58] sm:$0xff] %v517
        %534 = vst [vmem:[%s203 + $0x60] sm:$0xff] %v518
        %535 = vst [vmem:[%s203 + $0x68] sm:$0xff] %v519
        %536 = vst [vmem:[%s203 + $0x70] sm:$0xff] %v520
        %537 = vst [vmem:[%s203 + $0x78] sm:$0xff] %v521
        %s538 = sand.u32 %s97, 1
        %s539 = scalar_lea.sflag [#allocation4], %s538
        %s540 = sand.u32 %s97, 1
        %s541 = smul.addr %s540, 128
        %s542 = scalar_lea.vmem [#allocation7], %s541
        // Predicated region
        $region41: #{tpu_custom_call.1} parent=31 // pred_check
          %p543 = pneg %p107
        $region42: #{tpu_custom_call.1} parent=31 // pred_check_branch
          %545 = sbr.rel (%p543) target = $region44
        $region43: #{tpu_custom_call.1} parent=31 // pred_region
          %s546 = smul.u32 16, %s21
          %s548 = ssub.s32 2048, 2048
          %549 = vsyncadd %s539, %s548
          %s550 = smul.addr %s546, 128
          %s551 = scalar_lea.hbm %s3, %s550
          %s552 = sshll.u32 %s542, 4
          %s553 = int_to_ptr.vmem [resolvable:$true] %s552
          %558 = dma.vmem_to_hbm [thread:$0]  %s553, 2048, %s551, %s539, 128, 128, 8
        $region44: #{tpu_custom_call.1} parent=31 // pred_fallthru
          _
      $region32: #{tpu_custom_call.1} parent=5 // pred_fallthru
        _
      %p559 = scmp.le.s32.totalorder 2, %s16
      // Predicated region
      $region45: #{tpu_custom_call.1} parent=5 // pred_check
        %p560 = pneg %p559
      $region46: #{tpu_custom_call.1} parent=5 // pred_check_branch
        %562 = sbr.rel (%p560) target = $region48
      $region47: #{tpu_custom_call.1} parent=5 // pred_region
        %s563 = ssub.s32 %s16, 2
        // Predicated region
        $region49: #{tpu_custom_call.1} parent=47 // pred_check
          %p564 = pneg %p113
        $region50: #{tpu_custom_call.1} parent=47 // pred_check_branch
          %566 = sbr.rel (%p564) target = $region52
        $region51: #{tpu_custom_call.1} parent=47 // pred_region
          %s567 = sand.u32 %s98, 1
          %s568 = scalar_lea.sflag [#allocation4], %s567
          %s569 = sand.u32 %s98, 1
          %s570 = smul.addr %s569, 128
          %s571 = scalar_lea.vmem [#allocation7], %s570
          %572 = dma.done %s568, 2048
        $region52: #{tpu_custom_call.1} parent=47 // pred_fallthru
          _
      $region48: #{tpu_custom_call.1} parent=5 // pred_fallthru
        _
    $region6: #{tpu_custom_call.1} parent=1 // loop_footer
      %s20 = sadd.s32 1, %s16
    $region7: #{tpu_custom_call.1} parent=1 // loop_footer_branch
      %15 = sbr.rel target = $region3
    $region8: #{tpu_custom_call.1} parent=1 // loop_exit
      _
    %573 = vsyncpa [#allocation3], 1
    %s574 = scalar_lea.sflag [#allocation3], 1
    %575 = vsyncpa %s574, 1
    %576 = vsyncpa [#allocation6], 1
    %577 = vsyncpa [#allocation4], 1
    %s578 = scalar_lea.sflag [#allocation4], 1
    %579 = vsyncpa %s578, 1

</llo_original>
